<compile_context>
chip_gen: v7x
topology: tpu7x:2x2x1
jax: 0.10.0
libtpu: 0.0.40
codegen_flags: <defaults>
</compile_context>

<pallas_src>
import functools

import jax
import jax.numpy as jnp
from jax.experimental import pallas as pl
from jax.experimental.pallas import tpu as pltpu

LANES = 128
SUBLANES = 8


def _wmse_kernel(x_ref, y_ref, w_ref, o_ref, acc_ref, *,
                 bpc, br, n_elem, need_mask):
    # Zero the per-core running sum at the start of each reduction pass.
    @pl.when(pl.program_id(1) == 0)
    def _():
        acc_ref[...] = jnp.zeros_like(acc_ref)

    x = x_ref[...].astype(jnp.float32)
    y = y_ref[...].astype(jnp.float32)
    w = w_ref[...].astype(jnp.float32)
    d = x - y
    term = w * d * d                                   # (br, 128) f32

    if need_mask:
        # Global linear element index of every slot in this logical block.
        blk = pl.program_id(0) * bpc + pl.program_id(1)
        base = blk * (br * LANES)
        row_ids = jax.lax.broadcasted_iota(jnp.int32, (br, LANES), 0)
        col_ids = jax.lax.broadcasted_iota(jnp.int32, (br, LANES), 1)
        idx = base + row_ids * LANES + col_ids
        term = jnp.where(idx < n_elem, term, jnp.float32(0.0))

    # VPU-only partial reduction: fold the block down onto an (8,128) vreg tile.
    acc_ref[...] += term.reshape(br // SUBLANES, SUBLANES, LANES).sum(axis=0)

    # Emit this core's partial on the last reduction step.
    @pl.when(pl.program_id(1) == pl.num_programs(1) - 1)
    def _():
        o_ref[...] = acc_ref[...].reshape(1, SUBLANES, LANES)


def weighted_mse_loss(x, y, weight, *, block_rows=1024):
    """mean(weight * (x - y)**2), computed in a Pallas TPU kernel."""
    assert x.shape == y.shape == weight.shape, "broadcasting beyond same-shape not supported"
    # TODO(synk): PyTorch would broadcast weight/(x-y); only identical shapes handled here.
    n_elem = x.size

    # Flatten (free for contiguous arrays).  Pad with zeros ONLY when the
    # element count is not a multiple of 8*128, so the common case does not
    # materialize any extra HBM copies.  Zero weight padding contributes 0 to
    # the sum; the mean divides by the ORIGINAL element count.
    chunk = SUBLANES * LANES
    n_pad = (-n_elem) % chunk

    def _flat(a):
        f = jnp.ravel(a)
        if n_pad:
            f = jnp.concatenate([f, jnp.zeros((n_pad,), f.dtype)])
        return f.reshape(-1, LANES)

    xf, yf, wf = _flat(x), _flat(y), _flat(weight)
    rows = xf.shape[0]                      # multiple of 8 by construction

    # Tile size: as large as requested but never larger than the slab.
    br = min(block_rows, rows)
    br = ((br + SUBLANES - 1) // SUBLANES) * SUBLANES

    n_blocks = -(-rows // br)               # ceil
    n_split = 2 if n_blocks >= 2 else 1     # split across v7x's 2 TensorCores
    bpc = -(-n_blocks // n_split)           # blocks per core

    # Mask is only needed when the (n_split * bpc * br) row coverage overshoots
    # the true element count (partial last block / padded tail).
    need_mask = (n_split * bpc * br * LANES) != n_elem

    if n_split * bpc == n_blocks:
        in_map = lambda c, i: (c * bpc + i, 0)
    else:
        # Clamp so the (at most one) overhanging logical block re-reads a valid
        # block; its contribution is fully masked off in the kernel.
        in_map = lambda c, i: (jnp.minimum(c * bpc + i, n_blocks - 1), 0)

    kernel = functools.partial(_wmse_kernel, bpc=bpc, br=br,
                               n_elem=n_elem, need_mask=need_mask)

    in_spec = pl.BlockSpec((br, LANES), in_map)

    partials = pl.pallas_call(
        kernel,
        out_shape=jax.ShapeDtypeStruct((n_split, SUBLANES, LANES), jnp.float32),
        grid_spec=pltpu.PrefetchScalarGridSpec(
            num_scalar_prefetch=0,
            grid=(n_split, bpc),
            in_specs=[in_spec, in_spec, in_spec],
            out_specs=pl.BlockSpec((1, SUBLANES, LANES), lambda c, i: (c, 0, 0)),
            scratch_shapes=[pltpu.VMEM((SUBLANES, LANES), jnp.float32)],
        ),
        compiler_params=pltpu.CompilerParams(
            dimension_semantics=("parallel", "arbitrary"),
        ),
    )(xf, yf, wf)

    # Tiny final reduce (n_split*8*128 f32) + mean by the ORIGINAL count.
    return jnp.sum(partials) / jnp.float32(n_elem)


if __name__ == "__main__":
    key = jax.random.PRNGKey(0)
    kx, ky, kw = jax.random.split(key, 3)

    # Small NCHW-style shapes consistent with the module's forward.
    shape = (2, 4, 16, 16)
    x = jax.random.normal(kx, shape, dtype=jnp.float32)
    y = jax.random.normal(ky, shape, dtype=jnp.float32)
    weight = jax.random.uniform(kw, shape, dtype=jnp.float32)

    loss = weighted_mse_loss(x, y, weight)
    loss = jax.block_until_ready(loss)
    ref = jnp.mean(weight * (x - y) ** 2)
    assert jnp.allclose(loss, ref, rtol=1e-5, atol=1e-6), (loss, ref)

    # Second, non-128-divisible shape to exercise the padding + mask path.
    shape2 = (2, 3, 7, 5)
    x2 = jax.random.normal(kx, shape2, dtype=jnp.float32)
    y2 = jax.random.normal(ky, shape2, dtype=jnp.float32)
    w2 = jax.random.uniform(kw, shape2, dtype=jnp.float32)
    loss2 = jax.block_until_ready(weighted_mse_loss(x2, y2, w2))
    ref2 = jnp.mean(w2 * (x2 - y2) ** 2)
    assert jnp.allclose(loss2, ref2, rtol=1e-5, atol=1e-6), (loss2, ref2)

    print("KERNEL_OK")
</pallas_src>

<mosaic_0001>
module attributes {stable_mosaic.version = 11 : i64} {
  func.func @_wmse_kernel(%arg0: i32, %arg1: i32, %arg2: memref<16x128xf32, #tpu.memory_space<vmem>>, %arg3: memref<16x128xf32, #tpu.memory_space<vmem>>, %arg4: memref<16x128xf32, #tpu.memory_space<vmem>>, %arg5: memref<1x8x128xf32, #tpu.memory_space<vmem>>, %arg6: memref<8x128xf32, #tpu.memory_space<vmem>>) attributes {dimension_semantics = [#tpu.dimension_semantics<parallel>, #tpu.dimension_semantics<arbitrary>], iteration_bounds = array<i64: 1, 1>, scalar_prefetch = 0 : i64, scratch_operands = 1 : i64, tpu.core_type = #tpu.core_type<tc>, window_params = [{transform_indices = @transform_0, window_bounds = array<i64: 16, 128>}, {transform_indices = @transform_1, window_bounds = array<i64: 16, 128>}, {transform_indices = @transform_2, window_bounds = array<i64: 16, 128>}, {transform_indices = @transform_3, window_bounds = array<i64: 1, 8, 128>}]} {
    %c0_i32 = arith.constant 0 : i32
    %0 = arith.cmpi eq, %arg1, %c0_i32 : i32
    %1 = arith.extui %0 : i1 to i32
    %c0_i32_0 = arith.constant 0 : i32
    %2 = arith.cmpi ne, %1, %c0_i32_0 : i32
    scf.if %2 {
      %cst_12 = arith.constant 0.000000e+00 : f32
      %17 = vector.broadcast %cst_12 : f32 to vector<8x128xf32>
      %c0_13 = arith.constant 0 : index
      %c0_14 = arith.constant 0 : index
      %18 = vector.load %arg6[%c0_13, %c0_14] : memref<8x128xf32, #tpu.memory_space<vmem>>, vector<8x128xf32>
      tpu.vector_store %arg6[%c0_13, %c0_14], %17 {strides = array<i32>} : memref<8x128xf32, #tpu.memory_space<vmem>>, vector<8x128xf32>,
    } else {
    }
    %c0 = arith.constant 0 : index
    %c0_1 = arith.constant 0 : index
    %3 = vector.load %arg2[%c0, %c0_1] : memref<16x128xf32, #tpu.memory_space<vmem>>, vector<16x128xf32>
    %c0_2 = arith.constant 0 : index
    %c0_3 = arith.constant 0 : index
    %4 = vector.load %arg3[%c0_2, %c0_3] : memref<16x128xf32, #tpu.memory_space<vmem>>, vector<16x128xf32>
    %c0_4 = arith.constant 0 : index
    %c0_5 = arith.constant 0 : index
    %5 = vector.load %arg4[%c0_4, %c0_5] : memref<16x128xf32, #tpu.memory_space<vmem>>, vector<16x128xf32>
    %6 = arith.subf %3, %4 : vector<16x128xf32>
    %7 = arith.mulf %5, %6 : vector<16x128xf32>
    %8 = arith.mulf %7, %6 : vector<16x128xf32>
    %c0_6 = arith.constant 0 : index
    %c0_7 = arith.constant 0 : index
    %9 = vector.load %arg6[%c0_6, %c0_7] : memref<8x128xf32, #tpu.memory_space<vmem>>, vector<8x128xf32>
    %10 = vector.shape_cast %8 : vector<16x128xf32> to vector<2x8x128xf32>
    %cst = arith.constant dense<0.000000e+00> : vector<8x128xf32>
    %11 = vector.multi_reduction <add>, %10, %cst [0] : vector<2x8x128xf32> to vector<8x128xf32>
    %12 = arith.addf %9, %11 : vector<8x128xf32>
    %c0_8 = arith.constant 0 : index
    %c0_9 = arith.constant 0 : index
    %13 = vector.load %arg6[%c0_8, %c0_9] : memref<8x128xf32, #tpu.memory_space<vmem>>, vector<8x128xf32>
    tpu.vector_store %arg6[%c0_8, %c0_9], %12 {strides = array<i32>} : memref<8x128xf32, #tpu.memory_space<vmem>>, vector<8x128xf32>,
    %c0_i32_10 = arith.constant 0 : i32
    %14 = arith.cmpi eq, %arg1, %c0_i32_10 : i32
    %15 = arith.extui %14 : i1 to i32
    %c0_i32_11 = arith.constant 0 : i32
    %16 = arith.cmpi ne, %15, %c0_i32_11 : i32
    scf.if %16 {
      %c0_12 = arith.constant 0 : index
      %c0_13 = arith.constant 0 : index
      %17 = vector.load %arg6[%c0_12, %c0_13] : memref<8x128xf32, #tpu.memory_space<vmem>>, vector<8x128xf32>
      %18 = vector.shape_cast %17 : vector<8x128xf32> to vector<1x8x128xf32>
      %c0_14 = arith.constant 0 : index
      %c0_15 = arith.constant 0 : index
      %c0_16 = arith.constant 0 : index
      %19 = vector.load %arg5[%c0_14, %c0_15, %c0_16] : memref<1x8x128xf32, #tpu.memory_space<vmem>>, vector<1x8x128xf32>
      tpu.vector_store %arg5[%c0_14, %c0_15, %c0_16], %18 {strides = array<i32>} : memref<1x8x128xf32, #tpu.memory_space<vmem>>, vector<1x8x128xf32>,
    } else {
    }
    return
  }
  func.func @transform_0(%arg0: i32, %arg1: i32) -> (i32, i32) {
    %c1_i32 = arith.constant 1 : i32
    %0 = arith.muli %arg0, %c1_i32 : i32
    %1 = arith.addi %0, %arg1 : i32
    %c0_i32 = arith.constant 0 : i32
    %c0_i32_0 = arith.constant 0 : i32
    return %1, %c0_i32 : i32, i32
  }
  func.func @transform_1(%arg0: i32, %arg1: i32) -> (i32, i32) {
    %c1_i32 = arith.constant 1 : i32
    %0 = arith.muli %arg0, %c1_i32 : i32
    %1 = arith.addi %0, %arg1 : i32
    %c0_i32 = arith.constant 0 : i32
    %c0_i32_0 = arith.constant 0 : i32
    return %1, %c0_i32 : i32, i32
  }
  func.func @transform_2(%arg0: i32, %arg1: i32) -> (i32, i32) {
    %c1_i32 = arith.constant 1 : i32
    %0 = arith.muli %arg0, %c1_i32 : i32
    %1 = arith.addi %0, %arg1 : i32
    %c0_i32 = arith.constant 0 : i32
    %c0_i32_0 = arith.constant 0 : i32
    return %1, %c0_i32 : i32, i32
  }
  func.func @transform_3(%arg0: i32, %arg1: i32) -> (i32, i32, i32) {
    %c0_i32 = arith.constant 0 : i32
    %c0_i32_0 = arith.constant 0 : i32
    %c0_i32_1 = arith.constant 0 : i32
    return %arg0, %c0_i32, %c0_i32_0 : i32, i32, i32
  }
}

</mosaic_0001>

<llo_original>
// kernel: tpu_custom_call.1
$region0: #{tpu_custom_call.1}
  #allocation0 [shape = 'u32[]', space=smem, size = 0x4, offset = 0x4, fixed_abs, tag = 'smem constant byte address 0x4 - core index']
  #allocation1 [shape = 'u32[144,128]{1,0:T(1,128)}', space=vmem, size = 0x12000, scoped, tag = 'internal scratch']
  #allocation2 [shape = 'f32[8,128]{1,0:T(8,128)}', space=vmem, size = 0x1000, scoped, tag = 'scratch operand']
  %s0 = inlined_call_operand.hbm [shape: f32[16,128], index: 0, kind: input, shape index: {}]
  %s1 = inlined_call_operand.hbm [shape: f32[16,128], index: 1, kind: input, shape index: {}]
  %s2 = inlined_call_operand.hbm [shape: f32[16,128], index: 2, kind: input, shape index: {}]
  %s3 = inlined_call_operand.hbm [shape: f32[1,8,128], index: 3, kind: output, shape index: {}]
  %s4 = sld [smem:[#allocation0]]
  $region42: #{tpu_custom_call.1} parent=0
    _
  %s6 = ssub.s32 1, %s4
  %s7 = scalar_select 0, %s6, %s4
  $region1: #{tpu_custom_call.1} parent=0
    #allocation3 [shape = 'u8[8192]{0}', space=vmem, size = 0x2000, scoped, tag = 'input window, operand 0, single buffered']
    #allocation4 [shape = 's32[1]{0}', space=sflag, size = 0x4, scoped, tag = 'scoped memory for tpu_custom_call.1']
    #allocation5 [shape = 's32[1]{0}', space=sflag, size = 0x4, scoped, tag = 'scoped memory for tpu_custom_call.1']
    #allocation6 [shape = 'u8[8192]{0}', space=vmem, size = 0x2000, scoped, tag = 'input window, operand 1, single buffered']
    #allocation7 [shape = 's32[1]{0}', space=sflag, size = 0x4, scoped, tag = 'scoped memory for tpu_custom_call.1']
    #allocation8 [shape = 'u8[8192]{0}', space=vmem, size = 0x2000, scoped, tag = 'input window, operand 2, single buffered']
    #allocation9 [shape = 'u8[4096]{0}', space=vmem, size = 0x1000, scoped, tag = 'output window, operand 0, single buffered']
    %8 = vsyncpa [#allocation4], 0
    %9 = vsyncpa [#allocation7], 0
    %10 = vsyncpa [#allocation5], 0
    // Predicated region
    $region2: #{tpu_custom_call.1} parent=1 // pred_check
      _
    $region3: #{tpu_custom_call.1} parent=1 // pred_check_branch
      %12 = sbr.rel (0) target = $region5
    $region4: #{tpu_custom_call.1} parent=1 // pred_region
      %s13 = sadd.s32 0, 0
      %s14 = smul.u32 2, %s13
      %s16 = ssub.s32 256, 256
      %17 = vsyncadd [#allocation4], %s16
      %s18 = smul.addr %s14, 128
      %s19 = scalar_lea.hbm %s0, %s18
      %s20 = sshll.u32 [#allocation3], 4
      %s21 = int_to_ptr.vmem [resolvable:$true] %s20
      %26 = dma.hbm_to_vmem [thread:$0]  %s19, 256, %s21, [#allocation4], 128, 128, 8
    $region5: #{tpu_custom_call.1} parent=1 // pred_fallthru
      _
    // Predicated region
    $region6: #{tpu_custom_call.1} parent=1 // pred_check
      _
    $region7: #{tpu_custom_call.1} parent=1 // pred_check_branch
      %28 = sbr.rel (0) target = $region9
    $region8: #{tpu_custom_call.1} parent=1 // pred_region
      %s29 = sadd.s32 0, 0
      %s30 = smul.u32 2, %s29
      %s32 = ssub.s32 256, 256
      %33 = vsyncadd [#allocation7], %s32
      %s34 = smul.addr %s30, 128
      %s35 = scalar_lea.hbm %s1, %s34
      %s36 = sshll.u32 [#allocation6], 4
      %s37 = int_to_ptr.vmem [resolvable:$true] %s36
      %42 = dma.hbm_to_vmem [thread:$0]  %s35, 256, %s37, [#allocation7], 128, 128, 8
    $region9: #{tpu_custom_call.1} parent=1 // pred_fallthru
      _
    // Predicated region
    $region10: #{tpu_custom_call.1} parent=1 // pred_check
      _
    $region11: #{tpu_custom_call.1} parent=1 // pred_check_branch
      %44 = sbr.rel (0) target = $region13
    $region12: #{tpu_custom_call.1} parent=1 // pred_region
      %s45 = sadd.s32 0, 0
      %s46 = smul.u32 2, %s45
      %s48 = ssub.s32 256, 256
      %49 = vsyncadd [#allocation7], %s48
      %s50 = smul.addr %s46, 128
      %s51 = scalar_lea.hbm %s2, %s50
      %s52 = sshll.u32 [#allocation8], 4
      %s53 = int_to_ptr.vmem [resolvable:$true] %s52
      %58 = dma.hbm_to_vmem [thread:$0]  %s51, 256, %s53, [#allocation7], 128, 128, 8
    $region13: #{tpu_custom_call.1} parent=1 // pred_fallthru
      _
    // Predicated region
    $region14: #{tpu_custom_call.1} parent=1 // pred_check
      _
    $region15: #{tpu_custom_call.1} parent=1 // pred_check_branch
      %60 = sbr.rel (0) target = $region17
    $region16: #{tpu_custom_call.1} parent=1 // pred_region
      %61 = dma.done [#allocation4], 256
    $region17: #{tpu_custom_call.1} parent=1 // pred_fallthru
      _
    // Predicated region
    $region18: #{tpu_custom_call.1} parent=1 // pred_check
      _
    $region19: #{tpu_custom_call.1} parent=1 // pred_check_branch
      %63 = sbr.rel (0) target = $region21
    $region20: #{tpu_custom_call.1} parent=1 // pred_region
      %64 = dma.done [#allocation7], 256
    $region21: #{tpu_custom_call.1} parent=1 // pred_fallthru
      _
    // Predicated region
    $region22: #{tpu_custom_call.1} parent=1 // pred_check
      _
    $region23: #{tpu_custom_call.1} parent=1 // pred_check_branch
      %66 = sbr.rel (0) target = $region25
    $region24: #{tpu_custom_call.1} parent=1 // pred_region
      %67 = dma.done [#allocation7], 256
    $region25: #{tpu_custom_call.1} parent=1 // pred_fallthru
      _
    %s68 = sadd.s32 0, 0
    %s69 = smul.u32 2, %s68
    %s70 = sadd.s32 0, 0
    %s71 = smul.u32 2, %s70
    %s72 = sadd.s32 0, 0
    %s73 = smul.u32 2, %s72
    %p74 = scmp.eq.s32.totalorder 0, 0
    // Predicated region
    $region26: #{tpu_custom_call.1} parent=1 // pred_check
      %p75 = pneg %p74
    $region27: #{tpu_custom_call.1} parent=1 // pred_check_branch
      %77 = sbr.rel (%p75) target = $region29
    $region28: #{tpu_custom_call.1} parent=1 // pred_region
      %78 = vst [vmem:[#allocation2] sm:$0xff] 0.0
    $region29: #{tpu_custom_call.1} parent=1 // pred_fallthru
      _
    %v79 = vld [vmem:[#allocation3] sm:$0xff]
    %v80 = vld [vmem:[#allocation3 + $0x8] sm:$0xff]
    %v81 = vld [vmem:[#allocation6] sm:$0xff]
    %v82 = vld [vmem:[#allocation6 + $0x8] sm:$0xff]
    %v83 = vld [vmem:[#allocation8] sm:$0xff]
    %v84 = vld [vmem:[#allocation8 + $0x8] sm:$0xff]
    %v85 = vsub.f32 %v79, %v81
    %v86 = vsub.f32 %v80, %v82
    %v87 = vmul.f32 %v83, %v85
    %v88 = vmul.f32 %v84, %v86
    %v89 = vmul.f32 %v87, %v85
    %v90 = vmul.f32 %v88, %v86
    %v91 = vld [vmem:[#allocation2] sm:$0xff]
    %v92 = vadd.f32 %v89, %v90
    %v93 = vadd.f32 %v91, %v92
    %94 = vst [vmem:[#allocation2] sm:$0xff] %v93
    // Predicated region
    $region30: #{tpu_custom_call.1} parent=1 // pred_check
      %p95 = pneg %p74
    $region31: #{tpu_custom_call.1} parent=1 // pred_check_branch
      %97 = sbr.rel (%p95) target = $region33
    $region32: #{tpu_custom_call.1} parent=1 // pred_region
      %v98 = vld [vmem:[#allocation2] sm:$0xff]
      %99 = vst [vmem:[#allocation9] sm:$0xff] %v98
    $region33: #{tpu_custom_call.1} parent=1 // pred_fallthru
      _
    // Predicated region
    $region34: #{tpu_custom_call.1} parent=1 // pred_check
      _
    $region35: #{tpu_custom_call.1} parent=1 // pred_check_branch
      %101 = sbr.rel (0) target = $region37
    $region36: #{tpu_custom_call.1} parent=1 // pred_region
      %s103 = ssub.s32 128, 128
      %104 = vsyncadd [#allocation5], %s103
      %s106 = sshll.u32 [#allocation9], 4
      %s107 = int_to_ptr.vmem [resolvable:$true] %s106
      %109 = dma.vmem_to_hbm [thread:$0]  %s107, 128, %s3, [#allocation5]
    $region37: #{tpu_custom_call.1} parent=1 // pred_fallthru
      _
    // Predicated region
    $region38: #{tpu_custom_call.1} parent=1 // pred_check
      _
    $region39: #{tpu_custom_call.1} parent=1 // pred_check_branch
      %111 = sbr.rel (0) target = $region41
    $region40: #{tpu_custom_call.1} parent=1 // pred_region
      %112 = dma.done [#allocation5], 128
    $region41: #{tpu_custom_call.1} parent=1 // pred_fallthru
      _
    %113 = vsyncpa [#allocation4], 1
    %114 = vsyncpa [#allocation7], 1
    %115 = vsyncpa [#allocation5], 1

</llo_original>
